<compile_context>
chip_gen: v6e
topology: v6e:2x2x1
jax: 0.10.0
libtpu: 0.0.40
codegen_flags: <defaults>
</compile_context>

<pallas_src>
import functools

import numpy as np
import jax
import jax.numpy as jnp
from jax.experimental import pallas as pl
from jax.experimental.pallas import tpu as pltpu


def _round_up(n, m):
    return ((n + m - 1) // m) * m


def _pick_batch_block(B, C, P, L_pad, budget_bytes=8 << 20):
    """Batch segments per grid step.

    Segments are already lane-padded to L_pad (multiple of 128), so any bb is
    lane-dense.  Take the largest bb whose double-buffered streamed rows
    (x: C, block-diagonal vv: bb*C, out: P) fit the VMEM budget, preferring
    >=2 grid steps when B >= 2 so both v7x TensorCores get work (the extra
    grid step costs only ~0.35us on single-TC v5e/v6e).
    """
    def vmem_cost(bb):
        return 2 * (C + bb * C + P) * (bb * L_pad) * 4   # f32, double-buffered

    candidates = [bb for bb in range(1, B + 1)
                  if B % bb == 0 and vmem_cost(bb) <= budget_bytes]
    if not candidates:
        return 1
    multi = [bb for bb in candidates if B // bb >= 2]
    return max(multi if multi else candidates)


def _conv_svd_net_kernel(x_ref, usf_ref, vvbd_ref, w1m_ref, b1_ref, w2_ref,
                         b2_ref, out_ref, *, L, L_pad):
    C = x_ref.shape[0]
    nblk = x_ref.shape[1]            # bb * L_pad lanes, multiple of 128
    P = out_ref.shape[0]
    CR = w1m_ref.shape[0] // 4       # row stride of padded conv1/FFT tap blocks
    PR = w2_ref.shape[0] // 3        # row stride of padded conv2 tap blocks

    x = x_ref[...]                   # [C, nblk] channel-major raw input
    x_last = x[C - 1:C, :]           # == x[:, -1:, :] per batch segment
    xc = x - x_last                  # centered input (0 on padded lanes)

    # Per-segment lane position from a single iota (no concat chains).
    pos = jax.lax.broadcasted_iota(jnp.int32, (1, nblk), 1) % L_pad
    not_first = pos != 0
    not_last = pos != (L - 1)

    def conv_combine(z, bias, stride, nrows):
        # z stacks the three tap matmuls with row stride `stride` (rows padded
        # to a multiple of 8, lanes a multiple of 128, so the lane rotates and
        # every row slice are (8,128)-tile aligned).
        # out[:, l] = tap0[:, l-1] + tap1[:, l] + tap2[:, l+1] + bias with
        # per-segment conv padding=1: rotated cross-segment / padded lanes
        # only ever land on masked boundary positions.
        z_r = pltpu.roll(z, 1, 1)            # lane l <- l-1   (XLU rotate slot)
        z_l = pltpu.roll(z, nblk - 1, 1)     # lane l <- l+1
        return (jnp.where(not_first, z_r[0:nrows], 0.0)
                + z[stride:stride + nrows]
                + jnp.where(not_last, z_l[2 * stride:2 * stride + nrows], 0.0)
                + bias)

    # --- Conv_SVD.conv taps + folded FFT matrix: one fused [4*CR, C] @ [C, N].
    z = jnp.dot(w1m_ref[...], xc, preferred_element_type=jnp.float32)   # [4CR, N]
    conv_x = conv_combine(z, b1_ref[...], CR, C)                        # [C, N]
    fft_out = z[3 * CR:3 * CR + C]                                      # [C, N]

    # --- SVD branch: sin((u*wu*diag(ws*s)) @ (vh*wvh)) for ALL bb segments in
    # one MXU push (us flattened to [C, bb*C], vv block-diagonal [bb*C, N]).
    svd_out = jnp.sin(jnp.dot(usf_ref[...], vvbd_ref[...],
                              preferred_element_type=jnp.float32))      # [C, N]

    # --- Conv_SVD combine: relu(fft + svd) + conv
    out_1 = jnp.maximum(fft_out + svd_out, 0.0) + conv_x                # [C, N]

    # --- W_FFT_out conv (fused taps) + residual
    z2 = jnp.dot(w2_ref[...], out_1, preferred_element_type=jnp.float32)  # [3PR, N]
    out_ref[...] = conv_combine(z2, b2_ref[...], PR, P) + x_last


def conv_svd_net_forward(x, params):
    B, C, L = x.shape
    P = params["w2"].shape[0]
    L_pad = _round_up(L, 128)        # lane-dense per-segment width
    CR = _round_up(C, 8)             # 8-row-aligned tap blocks (conv1 / FFT)
    PR = _round_up(P, 8)             # 8-row-aligned tap blocks (conv2)

    x = x.astype(jnp.float32)
    x_last = x[:, C - 1:C, :]
    xc = x - x_last                  # needed host-side for the SVD factors

    # TODO(synk): torch.linalg.svd has no Pallas equivalent; the factorization
    # is computed in plain JAX glue, the reconstruction matmuls + sin run
    # inside the kernel.
    u, s, vh = jnp.linalg.svd(xc, full_matrices=False)
    wu, ws, wvh = jnp.linalg.svd(params["weight_SVD"].astype(jnp.float32),
                                 full_matrices=False)
    us = (u * wu[None, :, :]) * (ws[None, :] * s)[:, None, :]   # (u*wu)@diag(ws*s)
    vv = vh * wvh[None, :, :]                                   # vh * wvh

    # Fold fft -> einsum('bix,io->box') -> ifft (channel axis) into one real
    # CxC matrix (valid because the input is real).
    n = jnp.arange(C)
    F = jnp.exp(-2j * jnp.pi * jnp.outer(n, n) / C).astype(jnp.complex64)
    Finv = (jnp.exp(2j * jnp.pi * jnp.outer(n, n) / C) / C).astype(jnp.complex64)
    M = jnp.real(Finv @ params["weights_FFT"].T @ F).astype(jnp.float32)

    # Stack per-tap conv weights (each tap block padded to a multiple of 8
    # rows so in-kernel rolls / row slices stay tile-aligned); fold M into the
    # first conv's fused matmul.
    def pad_rows(a, r):
        return jnp.pad(a, ((0, r - a.shape[0]), (0, 0)))

    w1 = params["w1"].astype(jnp.float32)     # [C, C, 3]
    w2 = params["w2"].astype(jnp.float32)     # [P, C, 3]
    W1M = jnp.concatenate([pad_rows(w1[:, :, 0], CR), pad_rows(w1[:, :, 1], CR),
                           pad_rows(w1[:, :, 2], CR), pad_rows(M, CR)], axis=0)
    W2s = jnp.concatenate([pad_rows(w2[:, :, 0], PR), pad_rows(w2[:, :, 1], PR),
                           pad_rows(w2[:, :, 2], PR)], axis=0)
    b1 = params["b1"].reshape(C, 1).astype(jnp.float32)
    b2 = params["b2"].reshape(P, 1).astype(jnp.float32)

    bb = _pick_batch_block(B, C, P, L_pad)
    nblk = bb * L_pad

    # Channel-major, lane-dense activations: each batch segment zero-padded to
    # L_pad lanes so every block / slice / store is 128-lane aligned.
    pad = ((0, 0), (0, 0), (0, L_pad - L))
    x_p = jnp.pad(x, pad)                                     # [B, C, L_pad]
    vv_p = jnp.pad(vv, pad)                                   # [B, C, L_pad]
    x_cm = jnp.transpose(x_p, (1, 0, 2)).reshape(C, B * L_pad)

    # SVD factors for one fused matmul per block:
    #   us_flat[i] = [us[i*bb+0] | ... | us[i*bb+bb-1]]                 [C, bb*C]
    #   vv_bd[r*C:(r+1)*C, g*L_pad:(g+1)*L_pad] = vv[g]  iff g % bb == r
    us_flat = jnp.transpose(us.reshape(B // bb, bb, C, C),
                            (0, 2, 1, 3)).reshape(B // bb, C, bb * C)
    onehot = (jnp.arange(bb)[:, None] == (jnp.arange(B) % bb)[None, :])
    vv_cgl = jnp.transpose(vv_p, (1, 0, 2))                   # [C, B, L_pad]
    vv_bd = (onehot.astype(jnp.float32)[:, None, :, None]
             * vv_cgl[None, :, :, :]).reshape(bb * C, B * L_pad)

    out_cm = pl.pallas_call(
        functools.partial(_conv_svd_net_kernel, L=L, L_pad=L_pad),
        out_shape=jax.ShapeDtypeStruct((P, B * L_pad), jnp.float32),
        grid_spec=pltpu.PrefetchScalarGridSpec(
            num_scalar_prefetch=0,
            grid=(B // bb,),
            in_specs=[
                pl.BlockSpec((C, nblk), lambda i: (0, i)),             # x (channel-major)
                pl.BlockSpec((None, C, bb * C), lambda i: (i, 0, 0)),  # us_flat
                pl.BlockSpec((bb * C, nblk), lambda i: (0, i)),        # vv (block-diag)
                pl.BlockSpec((4 * CR, C), lambda i: (0, 0)),           # [conv1 taps; M]
                pl.BlockSpec((C, 1), lambda i: (0, 0)),                # conv1 bias
                pl.BlockSpec((3 * PR, C), lambda i: (0, 0)),           # conv2 taps
                pl.BlockSpec((P, 1), lambda i: (0, 0)),                # conv2 bias
            ],
            out_specs=pl.BlockSpec((P, nblk), lambda i: (0, i)),
        ),
        compiler_params=pltpu.CompilerParams(
            dimension_semantics=("parallel",),
            vmem_limit_bytes=32 * 1024 * 1024,
        ),
    )(x_cm, us_flat, vv_bd, W1M, b1, W2s, b2)

    # Back to [B, P, L], dropping the lane padding.
    return jnp.transpose(out_cm.reshape(P, B, L_pad), (1, 0, 2))[:, :, :L]


def ref_forward(x, params):
    """Pure-JAX replica of the PyTorch forward, for verification."""
    B, C, L = x.shape
    x_last = x[:, C - 1:C, :]
    xc = x - x_last

    def conv1d(xi, w, b):  # w: [O, I, 3], padding=1
        xp = jnp.pad(xi, ((0, 0), (0, 0), (1, 1)))
        out = (jnp.einsum('oi,bil->bol', w[:, :, 0], xp[:, :, 0:L], precision='highest')
               + jnp.einsum('oi,bil->bol', w[:, :, 1], xp[:, :, 1:L + 1], precision='highest')
               + jnp.einsum('oi,bil->bol', w[:, :, 2], xp[:, :, 2:L + 2], precision='highest'))
        return out + b[None, :, None]

    conv_x = conv1d(xc, params["w1"], params["b1"])

    u, s, vh = jnp.linalg.svd(xc, full_matrices=False)
    wu, ws, wvh = jnp.linalg.svd(params["weight_SVD"], full_matrices=False)
    s2 = ws[None, :] * s
    u2 = u * wu[None, :, :]
    v2 = vh * wvh[None, :, :]
    s_diag = jax.vmap(jnp.diag)(s2)
    out_svd = jnp.sin(jnp.einsum('bij,bjl->bil', u2 @ s_diag, v2, precision='highest'))

    x_ft = jnp.fft.fft(xc, axis=1)
    y = jnp.einsum('bix,io->box', x_ft, params["weights_FFT"], precision='highest')
    fft_out = jnp.real(jnp.fft.ifft(y, axis=1, n=C))

    out_1 = jax.nn.relu(fft_out + out_svd) + conv_x
    out = conv1d(out_1, params["w2"], params["b2"])
    return out + x_last


if __name__ == "__main__":
    # Module hyperparams: channels=C, pred_num=P, F_channels must equal L so
    # that (vh * wvh) broadcasts in the reference module.
    B, C, L = 2, 4, 16
    P = 3
    F_channels = L

    key = jax.random.PRNGKey(0)
    ks = jax.random.split(key, 8)
    scale = 1.0 / (C * C)
    weights_FFT = (scale * (jax.random.uniform(ks[0], (C, C))
                            + 1j * jax.random.uniform(ks[1], (C, C)))).astype(jnp.complex64)
    weight_SVD = jax.random.uniform(ks[2], (C, F_channels), dtype=jnp.float32)
    w1 = (jax.random.uniform(ks[3], (C, C, 3), dtype=jnp.float32) - 0.5) * 0.3
    b1 = (jax.random.uniform(ks[4], (C,), dtype=jnp.float32) - 0.5) * 0.3
    w2 = (jax.random.uniform(ks[5], (P, C, 3), dtype=jnp.float32) - 0.5) * 0.3
    b2 = (jax.random.uniform(ks[6], (P,), dtype=jnp.float32) - 0.5) * 0.3
    x = jax.random.normal(ks[7], (B, C, L), dtype=jnp.float32)

    params = dict(weights_FFT=weights_FFT, weight_SVD=weight_SVD,
                  w1=w1, b1=b1, w2=w2, b2=b2)

    out = conv_svd_net_forward(x, params)
    jax.block_until_ready(out)

    ref = ref_forward(x, params)
    assert out.shape == (B, P, L)
    np.testing.assert_allclose(np.asarray(out), np.asarray(ref), rtol=2e-3, atol=2e-3)
    print("KERNEL_OK")
</pallas_src>

<mosaic_0001>
module attributes {stable_mosaic.version = 11 : i64} {
  func.func @_conv_svd_net_kernel(%arg0: i32, %arg1: memref<4x128xf32, #tpu.memory_space<vmem>>, %arg2: memref<1x4x4xf32, #tpu.memory_space<vmem>>, %arg3: memref<4x128xf32, #tpu.memory_space<vmem>>, %arg4: memref<32x4xf32, #tpu.memory_space<vmem>>, %arg5: memref<4x1xf32, #tpu.memory_space<vmem>>, %arg6: memref<24x4xf32, #tpu.memory_space<vmem>>, %arg7: memref<3x1xf32, #tpu.memory_space<vmem>>, %arg8: memref<3x128xf32, #tpu.memory_space<vmem>>) attributes {dimension_semantics = [#tpu.dimension_semantics<parallel>], iteration_bounds = array<i64: 2>, scalar_prefetch = 0 : i64, scratch_operands = 0 : i64, tpu.core_type = #tpu.core_type<tc>, window_params = [{transform_indices = @transform_0, window_bounds = array<i64: 4, 128>}, {transform_indices = @transform_1, window_bounds = array<i64: 1, 4, 4>}, {transform_indices = @transform_2, window_bounds = array<i64: 4, 128>}, {pipeline_mode = #tpu.pipeline_mode<synchronous>, transform_indices = @transform_3, window_bounds = array<i64: 32, 4>}, {pipeline_mode = #tpu.pipeline_mode<synchronous>, transform_indices = @transform_4, window_bounds = array<i64: 4, 1>}, {pipeline_mode = #tpu.pipeline_mode<synchronous>, transform_indices = @transform_5, window_bounds = array<i64: 24, 4>}, {pipeline_mode = #tpu.pipeline_mode<synchronous>, transform_indices = @transform_6, window_bounds = array<i64: 3, 1>}, {transform_indices = @transform_7, window_bounds = array<i64: 3, 128>}]} {
    %c0 = arith.constant 0 : index
    %c0_0 = arith.constant 0 : index
    %0 = vector.load %arg1[%c0, %c0_0] : memref<4x128xf32, #tpu.memory_space<vmem>>, vector<4x128xf32>
    %1 = vector.extract_strided_slice %0 {offsets = [3, 0], sizes = [1, 128], strides = [1, 1]} : vector<4x128xf32> to vector<1x128xf32>
    %2 = vector.broadcast %1 : vector<1x128xf32> to vector<4x128xf32>
    %3 = arith.subf %0, %2 : vector<4x128xf32>
    %4 = tpu.iota {dimensions = array<i32: 1>} : vector<1x128xi32>
    %c128_i32 = arith.constant 128 : i32
    %c0_i32 = arith.constant 0 : i32
    %5 = arith.cmpi eq, %c128_i32, %c0_i32 : i32
    %c1_i32 = arith.constant 1 : i32
    %6 = arith.select %5, %c1_i32, %c128_i32 : i32
    %7 = vector.broadcast %6 : i32 to vector<1x128xi32>
    %8 = arith.remsi %4, %7 : vector<1x128xi32>
    %c0_i32_1 = arith.constant 0 : i32
    %9 = vector.broadcast %c0_i32_1 : i32 to vector<1x128xi32>
    %10 = arith.cmpi ne, %8, %9 : vector<1x128xi32>
    %c0_i32_2 = arith.constant 0 : i32
    %11 = vector.broadcast %c0_i32_2 : i32 to vector<1x128xi32>
    %12 = arith.cmpi slt, %8, %11 : vector<1x128xi32>
    %c0_i32_3 = arith.constant 0 : i32
    %13 = arith.cmpi slt, %6, %c0_i32_3 : i32
    %14 = vector.broadcast %13 : i1 to vector<1x128xi1>
    %15 = vector.broadcast %14 : vector<1x128xi1> to vector<1x128xi1>
    %16 = arith.xori %12, %15 : vector<1x128xi1>
    %17 = arith.andi %16, %10 : vector<1x128xi1>
    %18 = vector.broadcast %6 : i32 to vector<1x128xi32>
    %19 = arith.addi %8, %18 : vector<1x128xi32>
    %20 = arith.select %17, %19, %8 : vector<1x128xi1>, vector<1x128xi32>
    %c0_i32_4 = arith.constant 0 : i32
    %21 = vector.broadcast %c0_i32_4 : i32 to vector<1x128xi32>
    %22 = arith.cmpi ne, %20, %21 : vector<1x128xi32>
    %c15_i32 = arith.constant 15 : i32
    %23 = vector.broadcast %c15_i32 : i32 to vector<1x128xi32>
    %24 = arith.cmpi ne, %20, %23 : vector<1x128xi32>
    %c0_5 = arith.constant 0 : index
    %c0_6 = arith.constant 0 : index
    %25 = vector.load %arg4[%c0_5, %c0_6] : memref<32x4xf32, #tpu.memory_space<vmem>>, vector<32x4xf32>
    %cst = arith.constant dense<0.000000e+00> : vector<32x128xf32>
    %26 = tpu.matmul %25, %3, %cst {dimension_numbers = #tpu.dot_dimension_numbers<[1], [0], [0], [1], [0, 0, 1, 1], [], []>} : vector<32x4xf32>, vector<4x128xf32>, vector<32x128xf32> -> vector<32x128xf32>
    %c0_7 = arith.constant 0 : index
    %c0_8 = arith.constant 0 : index
    %27 = vector.load %arg5[%c0_7, %c0_8] : memref<4x1xf32, #tpu.memory_space<vmem>>, vector<4x1xf32>
    %c1_i32_9 = arith.constant 1 : i32
    %28 = tpu.dynamic_rotate %26 by %c1_i32_9 dim 1 : vector<32x128xf32>, i32 -> vector<32x128xf32>
    %c127_i32 = arith.constant 127 : i32
    %29 = tpu.dynamic_rotate %26 by %c127_i32 dim 1 : vector<32x128xf32>, i32 -> vector<32x128xf32>
    %30 = vector.extract_strided_slice %28 {offsets = [0, 0], sizes = [4, 128], strides = [1, 1]} : vector<32x128xf32> to vector<4x128xf32>
    %cst_10 = arith.constant 0.000000e+00 : f32
    %31 = vector.shape_cast %22 : vector<1x128xi1> to vector<1x128xi1>
    %32 = vector.broadcast %31 : vector<1x128xi1> to vector<4x128xi1>
    %33 = vector.broadcast %cst_10 : f32 to vector<4x128xf32>
    %34 = arith.select %32, %30, %33 : vector<4x128xi1>, vector<4x128xf32>
    %35 = vector.extract_strided_slice %26 {offsets = [8, 0], sizes = [4, 128], strides = [1, 1]} : vector<32x128xf32> to vector<4x128xf32>
    %36 = arith.addf %34, %35 : vector<4x128xf32>
    %37 = vector.extract_strided_slice %29 {offsets = [16, 0], sizes = [4, 128], strides = [1, 1]} : vector<32x128xf32> to vector<4x128xf32>
    %cst_11 = arith.constant 0.000000e+00 : f32
    %38 = vector.shape_cast %24 : vector<1x128xi1> to vector<1x128xi1>
    %39 = vector.broadcast %38 : vector<1x128xi1> to vector<4x128xi1>
    %40 = vector.broadcast %cst_11 : f32 to vector<4x128xf32>
    %41 = arith.select %39, %37, %40 : vector<4x128xi1>, vector<4x128xf32>
    %42 = arith.addf %36, %41 : vector<4x128xf32>
    %43 = vector.broadcast %27 : vector<4x1xf32> to vector<4x128xf32>
    %44 = arith.addf %42, %43 : vector<4x128xf32>
    %45 = vector.extract_strided_slice %26 {offsets = [24, 0], sizes = [4, 128], strides = [1, 1]} : vector<32x128xf32> to vector<4x128xf32>
    %c0_12 = arith.constant 0 : index
    %c0_13 = arith.constant 0 : index
    %c0_14 = arith.constant 0 : index
    %46 = vector.load %arg2[%c0_12, %c0_13, %c0_14] : memref<1x4x4xf32, #tpu.memory_space<vmem>>, vector<1x4x4xf32>
    %47 = vector.shape_cast %46 : vector<1x4x4xf32> to vector<4x4xf32>
    %c0_15 = arith.constant 0 : index
    %c0_16 = arith.constant 0 : index
    %48 = vector.load %arg3[%c0_15, %c0_16] : memref<4x128xf32, #tpu.memory_space<vmem>>, vector<4x128xf32>
    %cst_17 = arith.constant dense<0.000000e+00> : vector<4x128xf32>
    %49 = tpu.matmul %47, %48, %cst_17 {dimension_numbers = #tpu.dot_dimension_numbers<[1], [0], [0], [1], [0, 0, 1, 1], [], []>} : vector<4x4xf32>, vector<4x128xf32>, vector<4x128xf32> -> vector<4x128xf32>
    %50 = math.sin %49 : vector<4x128xf32>
    %51 = arith.addf %45, %50 : vector<4x128xf32>
    %cst_18 = arith.constant 0.000000e+00 : f32
    %52 = vector.broadcast %cst_18 : f32 to vector<4x128xf32>
    %53 = arith.maximumf %51, %52 : vector<4x128xf32>
    %54 = arith.addf %53, %44 : vector<4x128xf32>
    %c0_19 = arith.constant 0 : index
    %c0_20 = arith.constant 0 : index
    %55 = vector.load %arg6[%c0_19, %c0_20] : memref<24x4xf32, #tpu.memory_space<vmem>>, vector<24x4xf32>
    %cst_21 = arith.constant dense<0.000000e+00> : vector<24x128xf32>
    %56 = tpu.matmul %55, %54, %cst_21 {dimension_numbers = #tpu.dot_dimension_numbers<[1], [0], [0], [1], [0, 0, 1, 1], [], []>} : vector<24x4xf32>, vector<4x128xf32>, vector<24x128xf32> -> vector<24x128xf32>
    %c0_22 = arith.constant 0 : index
    %c0_23 = arith.constant 0 : index
    %57 = vector.load %arg7[%c0_22, %c0_23] : memref<3x1xf32, #tpu.memory_space<vmem>>, vector<3x1xf32>
    %c1_i32_24 = arith.constant 1 : i32
    %58 = tpu.dynamic_rotate %56 by %c1_i32_24 dim 1 : vector<24x128xf32>, i32 -> vector<24x128xf32>
    %c127_i32_25 = arith.constant 127 : i32
    %59 = tpu.dynamic_rotate %56 by %c127_i32_25 dim 1 : vector<24x128xf32>, i32 -> vector<24x128xf32>
    %60 = vector.extract_strided_slice %58 {offsets = [0, 0], sizes = [3, 128], strides = [1, 1]} : vector<24x128xf32> to vector<3x128xf32>
    %cst_26 = arith.constant 0.000000e+00 : f32
    %61 = vector.shape_cast %22 : vector<1x128xi1> to vector<1x128xi1>
    %62 = vector.broadcast %61 : vector<1x128xi1> to vector<3x128xi1>
    %63 = vector.broadcast %cst_26 : f32 to vector<3x128xf32>
    %64 = arith.select %62, %60, %63 : vector<3x128xi1>, vector<3x128xf32>
    %65 = vector.extract_strided_slice %56 {offsets = [8, 0], sizes = [3, 128], strides = [1, 1]} : vector<24x128xf32> to vector<3x128xf32>
    %66 = arith.addf %64, %65 : vector<3x128xf32>
    %67 = vector.extract_strided_slice %59 {offsets = [16, 0], sizes = [3, 128], strides = [1, 1]} : vector<24x128xf32> to vector<3x128xf32>
    %cst_27 = arith.constant 0.000000e+00 : f32
    %68 = vector.shape_cast %24 : vector<1x128xi1> to vector<1x128xi1>
    %69 = vector.broadcast %68 : vector<1x128xi1> to vector<3x128xi1>
    %70 = vector.broadcast %cst_27 : f32 to vector<3x128xf32>
    %71 = arith.select %69, %67, %70 : vector<3x128xi1>, vector<3x128xf32>
    %72 = arith.addf %66, %71 : vector<3x128xf32>
    %73 = vector.broadcast %57 : vector<3x1xf32> to vector<3x128xf32>
    %74 = arith.addf %72, %73 : vector<3x128xf32>
    %75 = vector.broadcast %1 : vector<1x128xf32> to vector<3x128xf32>
    %76 = arith.addf %74, %75 : vector<3x128xf32>
    %c0_28 = arith.constant 0 : index
    %c0_29 = arith.constant 0 : index
    %77 = vector.load %arg8[%c0_28, %c0_29] : memref<3x128xf32, #tpu.memory_space<vmem>>, vector<3x128xf32>
    tpu.vector_store %arg8[%c0_28, %c0_29], %76 {strides = array<i32>} : memref<3x128xf32, #tpu.memory_space<vmem>>, vector<3x128xf32>,
    return
  }
  func.func @transform_0(%arg0: i32) -> (i32, i32) {
    %c0_i32 = arith.constant 0 : i32
    %c0_i32_0 = arith.constant 0 : i32
    return %c0_i32, %arg0 : i32, i32
  }
  func.func @transform_1(%arg0: i32) -> (i32, i32, i32) {
    %c0_i32 = arith.constant 0 : i32
    %c0_i32_0 = arith.constant 0 : i32
    %c0_i32_1 = arith.constant 0 : i32
    return %arg0, %c0_i32, %c0_i32_0 : i32, i32, i32
  }
  func.func @transform_2(%arg0: i32) -> (i32, i32) {
    %c0_i32 = arith.constant 0 : i32
    %c0_i32_0 = arith.constant 0 : i32
    return %c0_i32, %arg0 : i32, i32
  }
  func.func @transform_3(%arg0: i32) -> (i32, i32) {
    %c0_i32 = arith.constant 0 : i32
    %c0_i32_0 = arith.constant 0 : i32
    %c0_i32_1 = arith.constant 0 : i32
    return %c0_i32, %c0_i32_0 : i32, i32
  }
  func.func @transform_4(%arg0: i32) -> (i32, i32) {
    %c0_i32 = arith.constant 0 : i32
    %c0_i32_0 = arith.constant 0 : i32
    %c0_i32_1 = arith.constant 0 : i32
    return %c0_i32, %c0_i32_0 : i32, i32
  }
  func.func @transform_5(%arg0: i32) -> (i32, i32) {
    %c0_i32 = arith.constant 0 : i32
    %c0_i32_0 = arith.constant 0 : i32
    %c0_i32_1 = arith.constant 0 : i32
    return %c0_i32, %c0_i32_0 : i32, i32
  }
  func.func @transform_6(%arg0: i32) -> (i32, i32) {
    %c0_i32 = arith.constant 0 : i32
    %c0_i32_0 = arith.constant 0 : i32
    %c0_i32_1 = arith.constant 0 : i32
    return %c0_i32, %c0_i32_0 : i32, i32
  }
  func.func @transform_7(%arg0: i32) -> (i32, i32) {
    %c0_i32 = arith.constant 0 : i32
    %c0_i32_0 = arith.constant 0 : i32
    return %c0_i32, %arg0 : i32, i32
  }
}

</mosaic_0001>

<llo_original>
// kernel: tpu_custom_call.1
$region0: #{tpu_custom_call.1}
  #allocation0 [shape = 'u32[]', space=smem, size = 0x4, offset = 0x4, fixed_abs, tag = 'smem constant byte address 0x4 - core index']
  #allocation1 [shape = 'u32[144,128]{1,0:T(1,128)}', space=vmem, size = 0x12000, scoped, tag = 'internal scratch']
  %s0 = inlined_call_operand.vmem [shape: f32[4,256], index: 0, kind: input, shape index: {}]
  %s1 = inlined_call_operand.vmem [shape: f32[2,4,4], index: 1, kind: input, shape index: {}]
  %s2 = inlined_call_operand.vmem [shape: f32[4,256], index: 2, kind: input, shape index: {}]
  %s3 = inlined_call_operand.vmem [shape: f32[32,4], index: 3, kind: input, shape index: {}]
  %s4 = inlined_call_operand.vmem [shape: f32[4,1], index: 4, kind: input, shape index: {}]
  %s5 = inlined_call_operand.vmem [shape: f32[24,4], index: 5, kind: input, shape index: {}]
  %s6 = inlined_call_operand.vmem [shape: f32[3,1], index: 6, kind: input, shape index: {}]
  %s7 = inlined_call_operand.hbm [shape: f32[3,256], index: 7, kind: output, shape index: {}]
  %s8 = sld [smem:[#allocation0]]
  $region61: #{tpu_custom_call.1} parent=0
    _
  %s10 = ssub.s32 1, %s8
  %s11 = scalar_select 0, %s10, %s8
  $region1: #{tpu_custom_call.1} parent=0
    #allocation2 [shape = 'u8[4096]{0}', space=vmem, size = 0x1000, scoped, tag = 'output window, operand 0']
    #allocation3 [shape = 's32[2]{0}', space=sflag, size = 0x8, scoped, tag = 'scoped memory for tpu_custom_call.1']
    %12 = vsyncpa [#allocation3], 0
    %s13 = scalar_lea.sflag [#allocation3], 1
    %14 = vsyncpa %s13, 0
    loop: start=0, step=1, limit=4
    $region2: #{tpu_custom_call.1} parent=1 // loop_pre_header
      _
    $region3: #{tpu_custom_call.1} parent=1 // loop_header
      %s16 = sphi 0, %s20
      %p17 = scmp.ge.s32.totalorder %s16, 4
      %s26 = sphi 0, %s28
      %s29 = sphi 0, %s26
      %s30 = sphi 0, %s29
      %s46 = sphi 0, %s30
      %s52 = sphi 0, %s54
      %s55 = sphi 0, %s52
      %s56 = sphi 0, %s55
      %s72 = sphi 0, %s56
      %s78 = sphi 0, %s80
      %s81 = sphi 0, %s78
      %s82 = sphi 0, %s81
      %s98 = sphi 0, %s82
      %s102 = sphi 0, %s102
      %s104 = sphi 0, %s102
      %s105 = sphi 0, %s104
      %s119 = sphi 0, %s105
      %s123 = sphi 0, %s123
      %s125 = sphi 0, %s123
      %s126 = sphi 0, %s125
      %s140 = sphi 0, %s126
      %s144 = sphi 0, %s144
      %s146 = sphi 0, %s144
      %s147 = sphi 0, %s146
      %s161 = sphi 0, %s147
      %s165 = sphi 0, %s165
      %s167 = sphi 0, %s165
      %s168 = sphi 0, %s167
      %s182 = sphi 0, %s168
      %s188 = sphi 0, %s190
      %s191 = sphi 0, %s188
      %s192 = sphi 0, %s191
      %s208 = sphi 0, %s192
    $region4: #{tpu_custom_call.1} parent=1 // loop_header_branch
      %19 = sbr.rel (%p17) target = $region8
    $region5: #{tpu_custom_call.1} parent=1 // loop_body
      %s21 = ssub.s32 %s16, 1
      %s22 = ssub.s32 %s16, 2
      %s23 = sadd.s32 %s16, 1
      %s24 = ssub.s32 %s16, %s23
      %p25 = scmp.eq.s32.totalorder %s24, 0
      %s27 = sadd.s32 %s26, 1
      %s28 = scalar_select %p25, %s26, %s27
      %p31 = pneg %p25
      %p32 = scmp.eq.s32.totalorder %s16, 1
      %p33 = por %p31, %p32
      %p34 = scmp.ne.s32.totalorder %s26, %s29
      %p35 = scmp.eq.s32.totalorder %s16, 0
      %p36 = por %p34, %p35
      %p37 = scmp.ne.s32.totalorder %s26, %s29
      %p38 = scmp.eq.s32.totalorder %s21, 1
      %p39 = por %p37, %p38
      %p40 = scmp.ne.s32.totalorder %s29, %s30
      %p41 = scmp.eq.s32.totalorder %s21, 0
      %p42 = por %p40, %p41
      %p43 = scmp.ne.s32.totalorder %s29, %s30
      %p44 = scmp.eq.s32.totalorder %s22, 1
      %p45 = por %p43, %p44
      %p47 = scmp.ne.s32.totalorder %s30, %s46
      %p48 = scmp.eq.s32.totalorder %s22, 0
      %p49 = por %p47, %p48
      %s50 = ssub.s32 %s16, %s23
      %p51 = scmp.eq.s32.totalorder %s50, 0
      %s53 = sadd.s32 %s52, 1
      %s54 = scalar_select %p51, %s52, %s53
      %p57 = pneg %p51
      %p58 = scmp.eq.s32.totalorder %s16, 1
      %p59 = por %p57, %p58
      %p60 = scmp.ne.s32.totalorder %s52, %s55
      %p61 = scmp.eq.s32.totalorder %s16, 0
      %p62 = por %p60, %p61
      %p63 = scmp.ne.s32.totalorder %s52, %s55
      %p64 = scmp.eq.s32.totalorder %s21, 1
      %p65 = por %p63, %p64
      %p66 = scmp.ne.s32.totalorder %s55, %s56
      %p67 = scmp.eq.s32.totalorder %s21, 0
      %p68 = por %p66, %p67
      %p69 = scmp.ne.s32.totalorder %s55, %s56
      %p70 = scmp.eq.s32.totalorder %s22, 1
      %p71 = por %p69, %p70
      %p73 = scmp.ne.s32.totalorder %s56, %s72
      %p74 = scmp.eq.s32.totalorder %s22, 0
      %p75 = por %p73, %p74
      %s76 = ssub.s32 %s16, %s23
      %p77 = scmp.eq.s32.totalorder %s76, 0
      %s79 = sadd.s32 %s78, 1
      %s80 = scalar_select %p77, %s78, %s79
      %p83 = pneg %p77
      %p84 = scmp.eq.s32.totalorder %s16, 1
      %p85 = por %p83, %p84
      %p86 = scmp.ne.s32.totalorder %s78, %s81
      %p87 = scmp.eq.s32.totalorder %s16, 0
      %p88 = por %p86, %p87
      %p89 = scmp.ne.s32.totalorder %s78, %s81
      %p90 = scmp.eq.s32.totalorder %s21, 1
      %p91 = por %p89, %p90
      %p92 = scmp.ne.s32.totalorder %s81, %s82
      %p93 = scmp.eq.s32.totalorder %s21, 0
      %p94 = por %p92, %p93
      %p95 = scmp.ne.s32.totalorder %s81, %s82
      %p96 = scmp.eq.s32.totalorder %s22, 1
      %p97 = por %p95, %p96
      %p99 = scmp.ne.s32.totalorder %s82, %s98
      %p100 = scmp.eq.s32.totalorder %s22, 0
      %p101 = por %p99, %p100
      %s103 = sadd.s32 %s102, 1
      %p106 = scmp.eq.s32.totalorder %s16, 1
      %p107 = scmp.ne.s32.totalorder %s102, %s104
      %p108 = scmp.eq.s32.totalorder %s16, 0
      %p109 = por %p107, %p108
      %p110 = scmp.ne.s32.totalorder %s102, %s104
      %p111 = scmp.eq.s32.totalorder %s21, 1
      %p112 = por %p110, %p111
      %p113 = scmp.ne.s32.totalorder %s104, %s105
      %p114 = scmp.eq.s32.totalorder %s21, 0
      %p115 = por %p113, %p114
      %p116 = scmp.ne.s32.totalorder %s104, %s105
      %p117 = scmp.eq.s32.totalorder %s22, 1
      %p118 = por %p116, %p117
      %p120 = scmp.ne.s32.totalorder %s105, %s119
      %p121 = scmp.eq.s32.totalorder %s22, 0
      %p122 = por %p120, %p121
      %s124 = sadd.s32 %s123, 1
      %p127 = scmp.eq.s32.totalorder %s16, 1
      %p128 = scmp.ne.s32.totalorder %s123, %s125
      %p129 = scmp.eq.s32.totalorder %s16, 0
      %p130 = por %p128, %p129
      %p131 = scmp.ne.s32.totalorder %s123, %s125
      %p132 = scmp.eq.s32.totalorder %s21, 1
      %p133 = por %p131, %p132
      %p134 = scmp.ne.s32.totalorder %s125, %s126
      %p135 = scmp.eq.s32.totalorder %s21, 0
      %p136 = por %p134, %p135
      %p137 = scmp.ne.s32.totalorder %s125, %s126
      %p138 = scmp.eq.s32.totalorder %s22, 1
      %p139 = por %p137, %p138
      %p141 = scmp.ne.s32.totalorder %s126, %s140
      %p142 = scmp.eq.s32.totalorder %s22, 0
      %p143 = por %p141, %p142
      %s145 = sadd.s32 %s144, 1
      %p148 = scmp.eq.s32.totalorder %s16, 1
      %p149 = scmp.ne.s32.totalorder %s144, %s146
      %p150 = scmp.eq.s32.totalorder %s16, 0
      %p151 = por %p149, %p150
      %p152 = scmp.ne.s32.totalorder %s144, %s146
      %p153 = scmp.eq.s32.totalorder %s21, 1
      %p154 = por %p152, %p153
      %p155 = scmp.ne.s32.totalorder %s146, %s147
      %p156 = scmp.eq.s32.totalorder %s21, 0
      %p157 = por %p155, %p156
      %p158 = scmp.ne.s32.totalorder %s146, %s147
      %p159 = scmp.eq.s32.totalorder %s22, 1
      %p160 = por %p158, %p159
      %p162 = scmp.ne.s32.totalorder %s147, %s161
      %p163 = scmp.eq.s32.totalorder %s22, 0
      %p164 = por %p162, %p163
      %s166 = sadd.s32 %s165, 1
      %p169 = scmp.eq.s32.totalorder %s16, 1
      %p170 = scmp.ne.s32.totalorder %s165, %s167
      %p171 = scmp.eq.s32.totalorder %s16, 0
      %p172 = por %p170, %p171
      %p173 = scmp.ne.s32.totalorder %s165, %s167
      %p174 = scmp.eq.s32.totalorder %s21, 1
      %p175 = por %p173, %p174
      %p176 = scmp.ne.s32.totalorder %s167, %s168
      %p177 = scmp.eq.s32.totalorder %s21, 0
      %p178 = por %p176, %p177
      %p179 = scmp.ne.s32.totalorder %s167, %s168
      %p180 = scmp.eq.s32.totalorder %s22, 1
      %p181 = por %p179, %p180
      %p183 = scmp.ne.s32.totalorder %s168, %s182
      %p184 = scmp.eq.s32.totalorder %s22, 0
      %p185 = por %p183, %p184
      %s186 = ssub.s32 %s16, %s23
      %p187 = scmp.eq.s32.totalorder %s186, 0
      %s189 = sadd.s32 %s188, 1
      %s190 = scalar_select %p187, %s188, %s189
      %p193 = pneg %p187
      %p194 = scmp.eq.s32.totalorder %s16, 1
      %p195 = por %p193, %p194
      %p196 = scmp.ne.s32.totalorder %s188, %s191
      %p197 = scmp.eq.s32.totalorder %s16, 0
      %p198 = por %p196, %p197
      %p199 = scmp.ne.s32.totalorder %s188, %s191
      %p200 = scmp.eq.s32.totalorder %s21, 1
      %p201 = por %p199, %p200
      %p202 = scmp.ne.s32.totalorder %s191, %s192
      %p203 = scmp.eq.s32.totalorder %s21, 0
      %p204 = por %p202, %p203
      %p205 = scmp.ne.s32.totalorder %s191, %s192
      %p206 = scmp.eq.s32.totalorder %s22, 1
      %p207 = por %p205, %p206
      %p209 = scmp.ne.s32.totalorder %s192, %s208
      %p210 = scmp.eq.s32.totalorder %s22, 0
      %p211 = por %p209, %p210
      %p212 = scmp.le.s32.totalorder 1, %s16
      %p213 = scmp.lt.s32.totalorder %s16, 3
      %p214 = pnand %p212, %p213
      %p215 = pneg %p214
      // Predicated region
      $region9: #{tpu_custom_call.1} parent=5 // pred_check
        _
      $region10: #{tpu_custom_call.1} parent=5 // pred_check_branch
        %217 = sbr.rel (%p214) target = $region12
      $region11: #{tpu_custom_call.1} parent=5 // pred_region
        %s218 = ssub.s32 %s16, 1
        // Predicated region
        $region13: #{tpu_custom_call.1} parent=11 // pred_check
          %p219 = pneg %p115
        $region14: #{tpu_custom_call.1} parent=11 // pred_check_branch
          %221 = sbr.rel (%p219) target = $region16
        $region15: #{tpu_custom_call.1} parent=11 // pred_region
          _
        $region16: #{tpu_custom_call.1} parent=11 // pred_fallthru
          _
        // Predicated region
        $region17: #{tpu_custom_call.1} parent=11 // pred_check
          %p222 = pneg %p136
        $region18: #{tpu_custom_call.1} parent=11 // pred_check_branch
          %224 = sbr.rel (%p222) target = $region20
        $region19: #{tpu_custom_call.1} parent=11 // pred_region
          _
        $region20: #{tpu_custom_call.1} parent=11 // pred_fallthru
          _
        // Predicated region
        $region21: #{tpu_custom_call.1} parent=11 // pred_check
          %p225 = pneg %p157
        $region22: #{tpu_custom_call.1} parent=11 // pred_check_branch
          %227 = sbr.rel (%p225) target = $region24
        $region23: #{tpu_custom_call.1} parent=11 // pred_region
          _
        $region24: #{tpu_custom_call.1} parent=11 // pred_fallthru
          _
        // Predicated region
        $region25: #{tpu_custom_call.1} parent=11 // pred_check
          %p228 = pneg %p178
        $region26: #{tpu_custom_call.1} parent=11 // pred_check_branch
          %230 = sbr.rel (%p228) target = $region28
        $region27: #{tpu_custom_call.1} parent=11 // pred_region
          _
        $region28: #{tpu_custom_call.1} parent=11 // pred_fallthru
          _
      $region12: #{tpu_custom_call.1} parent=5 // pred_fallthru
        _
      %p231 = scmp.lt.s32.totalorder %s16, 2
      // Predicated region
      $region29: #{tpu_custom_call.1} parent=5 // pred_check
        %p232 = pneg %p231
      $region30: #{tpu_custom_call.1} parent=5 // pred_check_branch
        %234 = sbr.rel (%p232) target = $region32
      $region31: #{tpu_custom_call.1} parent=5 // pred_region
        // Predicated region
        $region33: #{tpu_custom_call.1} parent=31 // pred_check
          %p235 = pneg %p36
        $region34: #{tpu_custom_call.1} parent=31 // pred_check_branch
          %237 = sbr.rel (%p235) target = $region36
        $region35: #{tpu_custom_call.1} parent=31 // pred_region
          %p238 = scmp.lt.s32.totalorder %s16, 1
          %s239 = scalar_select %p238, %s16, 1
          %s240 = smul.addr %s239, 4
          %s241 = scalar_lea.vmem %s0, %s240
        $region36: #{tpu_custom_call.1} parent=31 // pred_fallthru
          _
        // Predicated region
        $region37: #{tpu_custom_call.1} parent=31 // pred_check
          %p242 = pneg %p62
        $region38: #{tpu_custom_call.1} parent=31 // pred_check_branch
          %244 = sbr.rel (%p242) target = $region40
        $region39: #{tpu_custom_call.1} parent=31 // pred_region
          %p245 = scmp.lt.s32.totalorder %s16, 1
          %s246 = scalar_select %p245, %s16, 1
          %s247 = smul.addr %s246, 4
          %s248 = scalar_lea.vmem %s1, %s247
        $region40: #{tpu_custom_call.1} parent=31 // pred_fallthru
          _
        // Predicated region
        $region41: #{tpu_custom_call.1} parent=31 // pred_check
          %p249 = pneg %p88
        $region42: #{tpu_custom_call.1} parent=31 // pred_check_branch
          %251 = sbr.rel (%p249) target = $region44
        $region43: #{tpu_custom_call.1} parent=31 // pred_region
          %p252 = scmp.lt.s32.totalorder %s16, 1
          %s253 = scalar_select %p252, %s16, 1
          %s254 = smul.addr %s253, 4
          %s255 = scalar_lea.vmem %s2, %s254
        $region44: #{tpu_custom_call.1} parent=31 // pred_fallthru
          _
      $region32: #{tpu_custom_call.1} parent=5 // pred_fallthru
        _
      %p256 = scmp.le.s32.totalorder 1, %s16
      %p257 = scmp.lt.s32.totalorder %s16, 3
      %p258 = pnand %p256, %p257
      %p259 = pneg %p258
      // Predicated region
      $region45: #{tpu_custom_call.1} parent=5 // pred_check
        _
      $region46: #{tpu_custom_call.1} parent=5 // pred_check_branch
        %261 = sbr.rel (%p258) target = $region48
      $region47: #{tpu_custom_call.1} parent=5 // pred_region
        %s262 = ssub.s32 %s16, 1
        %p263 = scmp.lt.s32.totalorder %s21, 1
        %s264 = scalar_select %p263, %s21, 1
        %s265 = smul.addr %s264, 4
        %s266 = scalar_lea.vmem %s0, %s265
        %p267 = pneg %p42
        %p268 = pneg %p39
        %p269 = scmp.lt.s32.totalorder %s21, 1
        %s270 = scalar_select %p269, %s21, 1
        %s271 = smul.addr %s270, 4
        %s272 = scalar_lea.vmem %s1, %s271
        %p273 = pneg %p68
        %p274 = pneg %p65
        %p275 = scmp.lt.s32.totalorder %s21, 1
        %s276 = scalar_select %p275, %s21, 1
        %s277 = smul.addr %s276, 4
        %s278 = scalar_lea.vmem %s2, %s277
        %p279 = pneg %p94
        %p280 = pneg %p91
        %p281 = pneg %p115
        %p282 = pneg %p112
        %p283 = pneg %p136
        %p284 = pneg %p133
        %p285 = pneg %p157
        %p286 = pneg %p154
        %p287 = pneg %p178
        %p288 = pneg %p175
        %p289 = pneg %p204
        %p290 = pneg %p201
        %s291 = sand.u32 %s191, 1
        %s292 = scalar_lea.sflag [#allocation3], %s291
        %s293 = sand.u32 %s191, 1
        %s294 = smul.addr %s293, 4
        %s295 = scalar_lea.vmem [#allocation2], %s294
        %p296 = scmp.lt.s32.totalorder %s21, 1
        %s297 = scalar_select %p296, %s21, 1
        %s298 = smul.addr %s297, 4
        %s299 = scalar_lea.vmem %s0, %s298
        %p300 = scmp.lt.s32.totalorder %s21, 1
        %s301 = scalar_select %p300, %s21, 1
        %s302 = smul.addr %s301, 4
        %s303 = scalar_lea.vmem %s1, %s302
        %p304 = scmp.lt.s32.totalorder %s21, 1
        %s305 = scalar_select %p304, %s21, 1
        %s306 = smul.addr %s305, 4
        %s307 = scalar_lea.vmem %s2, %s306
        %v308 = vld [vmem:[%s299] sm:$0xf]
        %v309 = vlaneseq
        %v310 = vshrl.u32 %v309, 7
        %v311 = vsub.s32 3, %v310
        %v312 = vrot.slane %v308, %v311
        %v313 = vsub.f32 %v308, %v312
        %v314 = vlaneseq
        %v315 = vand.u32 %v314, 127
        %vm316 = vcmp.lt.s32.totalorder %v315, 0
        %v317 = vsub.s32 0, %v315
        %v318 = vsel %vm316, %v317, %v315
        %v319 = vshrl.u32 %v318, 7
        %v320 = vand.u32 %v318, 127
        %v321 = vsub.s32 0, %v320
        %v322 = vsel %vm316, %v321, %v320
        %vm323 = vcmp.ne.s32.totalorder %v322, 0
        %vm324 = vcmp.lt.s32.totalorder %v322, 0
        %vm325 = vmand %vm324, %vm323
        %v326 = vadd.s32 %v322, 128
        %v327 = vsel %vm325, %v326, %v322
        %vm328 = vcmp.ne.s32.totalorder %v327, 0
        %vm329 = vcmp.ne.s32.totalorder %v327, 15
        %v330 = vld [vmem:[%s3] sm:$0xff]
        %v331 = vld [vmem:[%s3 + $0x8] sm:$0xff]
        %v332 = vld [vmem:[%s3 + $0x10] sm:$0xff]
        %v333 = vld [vmem:[%s3 + $0x18] sm:$0xff]
        %vm334 = vcmask 31744
        %v336 = vsel %vm334, %v330, 0
        %v339 = vsel %vm334, %v331, 0
        %v342 = vsel %vm334, %v332, 0
        %v345 = vsel %vm334, %v333, 0
        %vm347 = vcmask 1043456
        %v349 = vsel %vm347, %v313, 0
        %351 = vmatprep.subr.mxu0 0.0
        %352 = vmatpush1.msra.mxu0 0.0
        %353 = vmatprep.subr.mxu0 0.0
        %354 = vmatpush1.msra.mxu0 0.0
        %355 = vmatprep.subr.mxu0 0.0
        %356 = vmatpush1.msra.mxu0 0.0
        %357 = vmatprep.subr.mxu0 0.0
        %358 = vmatpush1.msra.mxu0 0.0
        %359 = vmatprep.subr.mxu0 0.0
        %360 = vmatpush1.msra.mxu0 0.0
        %361 = vmatprep.subr.mxu0 0.0
        %362 = vmatpush1.msra.mxu0 0.0
        %363 = vmatprep.subr.mxu0 0.0
        %364 = vmatpush1.msra.mxu0 0.0
        %365 = vmatprep.subr.mxu0 0.0
        %366 = vmatpush1.msra.mxu0 0.0
        %367 = vmatprep.subr.mxu0 0.0
        %368 = vmatpush1.msra.mxu0 0.0
        %369 = vmatprep.subr.mxu0 0.0
        %370 = vmatpush1.msra.mxu0 0.0
        %371 = vmatprep.subr.mxu0 0.0
        %372 = vmatpush1.msra.mxu0 0.0
        %373 = vmatprep.subr.mxu0 0.0
        %374 = vmatpush1.msra.mxu0 0.0
        %375 = vmatprep.subr.mxu0 0.0
        %376 = vmatpush1.msra.mxu0 0.0
        %377 = vmatprep.subr.mxu0 0.0
        %378 = vmatpush1.msra.mxu0 0.0
        %379 = vmatprep.subr.mxu0 0.0
        %380 = vmatpush1.msra.mxu0 0.0
        %381 = vmatprep.subr.mxu0 0.0
        %382 = vmatpush1.msra.mxu0 %v349
        %383 = vmatprep.subr.mxu0 0.0
        %384 = vmatpush2.msra.mxu0 0.0
        %385 = vmatprep.subr.mxu0 0.0
        %386 = vmatpush2.msra.mxu0 0.0
        %387 = vmatprep.subr.mxu0 0.0
        %388 = vmatpush2.msra.mxu0 0.0
        %389 = vmatprep.subr.mxu0 0.0
        %390 = vmatpush2.msra.mxu0 0.0
        %391 = vmatprep.subr.mxu0 0.0
        %392 = vmatpush2.msra.mxu0 0.0
        %393 = vmatprep.subr.mxu0 0.0
        %394 = vmatpush2.msra.mxu0 0.0
        %395 = vmatprep.subr.mxu0 0.0
        %396 = vmatpush2.msra.mxu0 0.0
        %397 = vmatprep.subr.mxu0 0.0
        %398 = vmatpush2.msra.mxu0 0.0
        %399 = vmatprep.subr.mxu0 0.0
        %400 = vmatpush2.msra.mxu0 0.0
        %401 = vmatprep.subr.mxu0 0.0
        %402 = vmatpush2.msra.mxu0 0.0
        %403 = vmatprep.subr.mxu0 0.0
        %404 = vmatpush2.msra.mxu0 0.0
        %405 = vmatprep.subr.mxu0 0.0
        %406 = vmatpush2.msra.mxu0 0.0
        %407 = vmatprep.subr.mxu0 0.0
        %408 = vmatpush2.msra.mxu0 0.0
        %409 = vmatprep.subr.mxu0 0.0
        %410 = vmatpush2.msra.mxu0 0.0
        %411 = vmatprep.subr.mxu0 0.0
        %412 = vmatpush2.msra.mxu0 0.0
        %413 = vmatprep.subr.mxu0 0.0
        %414 = vmatpush2.msra.mxu0 0.0
        %415 = vmatprep.mubr.f32.mxu0 0.0
        %416 = vmatmul.mubr.f32.gmra.mxu0 %v336
        %v417 = vpop.f32.mrf.mxu0
        %v418 = vadd.f32 0.0, %v417
        %v419 = vpop.f32.mrf.mxu0
        %420 = vmatprep.mubr.f32.mxu0 0.0
        %421 = vmatmul.mubr.f32.gmra.mxu0 %v339
        %v422 = vpop.f32.mrf.mxu0
        %v423 = vadd.f32 0.0, %v422
        %v424 = vpop.f32.mrf.mxu0
        %425 = vmatprep.mubr.f32.mxu0 0.0
        %426 = vmatmul.mubr.f32.gmra.mxu0 %v342
        %v427 = vpop.f32.mrf.mxu0
        %v428 = vadd.f32 0.0, %v427
        %v429 = vpop.f32.mrf.mxu0
        %430 = vmatprep.mubr.f32.mxu0 0.0
        %431 = vmatmul.mubr.f32.gmra.mxu0 %v345
        %v432 = vpop.f32.mrf.mxu0
        %v433 = vadd.f32 0.0, %v432
        %v434 = vpop.f32.mrf.mxu0
        %435 = vdwg.mxu0
        %v436 = vld [vmem:[%s4] sm:$0xf]
        %437 = vrot.lane.b32.xlu0 %v418, 1
        %v438 = vpop.permute.xlu0 %437
        %439 = vrot.lane.b32.xlu0 %v428, 127
        %v440 = vpop.permute.xlu0 %439
        %v441 = vsel %vm328, 1, 0
        %vm442 = vcmp.eq.s32.totalorder %v441, 1
        %v443 = vsel %vm442, %v438, 0.0
        %v444 = vadd.f32 %v443, %v423
        %v445 = vsel %vm329, 1, 0
        %vm446 = vcmp.eq.s32.totalorder %v445, 1
        %v447 = vsel %vm446, %v440, 0.0
        %v448 = vadd.f32 %v444, %v447
        %450 = vset.pattern.permute.xlu0 0
        %451 = vperm.xlu0 %450, %v436
        %v452 = vpop.permute.xlu0 %451
        %v454 = vadd.f32 %v448, %v452
        %v455 = vld [vmem:[%s303] sm:$0xf]
        %v456 = vld [vmem:[%s307] sm:$0xf]
        %v458 = vsel %vm334, %v455, 0
        %v461 = vsel %vm347, %v456, 0
        %463 = vmatprep.subr.mxu0 0.0
        %464 = vmatpush1.msra.mxu0 0.0
        %465 = vmatprep.subr.mxu0 0.0
        %466 = vmatpush1.msra.mxu0 0.0
        %467 = vmatprep.subr.mxu0 0.0
        %468 = vmatpush1.msra.mxu0 0.0
        %469 = vmatprep.subr.mxu0 0.0
        %470 = vmatpush1.msra.mxu0 0.0
        %471 = vmatprep.subr.mxu0 0.0
        %472 = vmatpush1.msra.mxu0 0.0
        %473 = vmatprep.subr.mxu0 0.0
        %474 = vmatpush1.msra.mxu0 0.0
        %475 = vmatprep.subr.mxu0 0.0
        %476 = vmatpush1.msra.mxu0 0.0
        %477 = vmatprep.subr.mxu0 0.0
        %478 = vmatpush1.msra.mxu0 0.0
        %479 = vmatprep.subr.mxu0 0.0
        %480 = vmatpush1.msra.mxu0 0.0
        %481 = vmatprep.subr.mxu0 0.0
        %482 = vmatpush1.msra.mxu0 0.0
        %483 = vmatprep.subr.mxu0 0.0
        %484 = vmatpush1.msra.mxu0 0.0
        %485 = vmatprep.subr.mxu0 0.0
        %486 = vmatpush1.msra.mxu0 0.0
        %487 = vmatprep.subr.mxu0 0.0
        %488 = vmatpush1.msra.mxu0 0.0
        %489 = vmatprep.subr.mxu0 0.0
        %490 = vmatpush1.msra.mxu0 0.0
        %491 = vmatprep.subr.mxu0 0.0
        %492 = vmatpush1.msra.mxu0 0.0
        %493 = vmatprep.subr.mxu0 0.0
        %494 = vmatpush1.msra.mxu0 %v461
        %495 = vmatprep.subr.mxu0 0.0
        %496 = vmatpush2.msra.mxu0 0.0
        %497 = vmatprep.subr.mxu0 0.0
        %498 = vmatpush2.msra.mxu0 0.0
        %499 = vmatprep.subr.mxu0 0.0
        %500 = vmatpush2.msra.mxu0 0.0
        %501 = vmatprep.subr.mxu0 0.0
        %502 = vmatpush2.msra.mxu0 0.0
        %503 = vmatprep.subr.mxu0 0.0
        %504 = vmatpush2.msra.mxu0 0.0
        %505 = vmatprep.subr.mxu0 0.0
        %506 = vmatpush2.msra.mxu0 0.0
        %507 = vmatprep.subr.mxu0 0.0
        %508 = vmatpush2.msra.mxu0 0.0
        %509 = vmatprep.subr.mxu0 0.0
        %510 = vmatpush2.msra.mxu0 0.0
        %511 = vmatprep.subr.mxu0 0.0
        %512 = vmatpush2.msra.mxu0 0.0
        %513 = vmatprep.subr.mxu0 0.0
        %514 = vmatpush2.msra.mxu0 0.0
        %515 = vmatprep.subr.mxu0 0.0
        %516 = vmatpush2.msra.mxu0 0.0
        %517 = vmatprep.subr.mxu0 0.0
        %518 = vmatpush2.msra.mxu0 0.0
        %519 = vmatprep.subr.mxu0 0.0
        %520 = vmatpush2.msra.mxu0 0.0
        %521 = vmatprep.subr.mxu0 0.0
        %522 = vmatpush2.msra.mxu0 0.0
        %523 = vmatprep.subr.mxu0 0.0
        %524 = vmatpush2.msra.mxu0 0.0
        %525 = vmatprep.subr.mxu0 0.0
        %526 = vmatpush2.msra.mxu0 0.0
        %527 = vmatprep.mubr.f32.mxu0 0.0
        %528 = vmatmul.mubr.f32.gmra.mxu0 %v458
        %v529 = vpop.f32.mrf.mxu0
        %v530 = vadd.f32 0.0, %v529
        %v531 = vpop.f32.mrf.mxu0
        %532 = vdwg.mxu0
        %v533 = vand.u32 2147483647, %v530
        %vm534 = vcmp.le.f32.partialorder %v533, 0.7853982
        %vm535 = vcmp.lt.s32.totalorder %v530, 0
        %v536 = vand.u32 %v530, 2139095040
        %v537 = vshrl.u32 %v536, 23
        %v538 = vsub.s32 %v537, 127
        %v539 = vand.u32 2147483647, %v530
        %v540 = vand.u32 %v539, 8388607
        %v541 = vor.u32 %v540, 8388608
        %v542 = vsub.s32 0, %v541
        %v543 = vadd.s32 %v538, 1
        %vm544 = vcmp.gt.s32.totalorder %v543, 0
        %v545 = vsel %vm544, %v543, 0
        %v546 = vshrl.u32 %v545, 5
        %v547 = vand.u32 %v545, 31
        %v548 = vsub.s32 32, %v547
        %v549 = vshrl.u32 683565275, %v548
        %v550 = vshll.u32 683565275, %v547
        %v551 = vshrl.u32 2475754826, %v548
        %v552 = vor.u32 %v550, %v551
        %v553 = vshll.u32 2475754826, %v547
        %v554 = vshrl.u32 2131351028, %v548
        %v555 = vor.u32 %v553, %v554
        %v556 = vshll.u32 2131351028, %v547
        %v557 = vshrl.u32 2102212464, %v548
        %v558 = vor.u32 %v556, %v557
        %v559 = vshll.u32 2102212464, %v547
        %v560 = vshrl.u32 920167782, %v548
        %v561 = vor.u32 %v559, %v560
        %v562 = vshll.u32 920167782, %v547
        %v563 = vshrl.u32 1326507024, %v548
        %v564 = vor.u32 %v562, %v563
        %vm565 = vcmp.lt.s32.totalorder %v546, 1
        %vm566 = vcmp.lt.s32.totalorder %v546, 2
        %vm567 = vcmp.lt.s32.totalorder %v546, 3
        %vm568 = vcmp.lt.s32.totalorder %v546, 4
        %v569 = vsel %vm565, %v549, %v552
        %v570 = vsel %vm568, %v558, 2102212464
        %v571 = vsel %vm567, %v555, %v570
        %v572 = vsel %vm566, %v569, %v571
        %v573 = vsel %vm565, %v552, %v555
        %v574 = vsel %vm568, %v561, 920167782
        %v575 = vsel %vm567, %v558, %v574
        %v576 = vsel %vm566, %v573, %v575
        %v577 = vsel %vm565, %v555, %v558
        %v578 = vsel %vm568, %v564, 1326507024
        %v579 = vsel %vm567, %v561, %v578
        %v580 = vsel %vm566, %v577, %v579
        %v581 = vshll.u32 %v541, 8
        %v582 = vmul.u32.u64.compose %v581, %v580
        %v583 = vextract.low.u32 %v582
        %v584 = vextract.high.u32 %v582
        %v585 = vmul.u32.u64.compose %v581, %v576
        %v586 = vextract.low.u32 %v585
        %v587 = vextract.high.u32 %v585
        %v588 = vmul.u32 %v581, %v572
        %v589 = vadd.s32 %v584, %v586
        %vm590 = vc.u32 %v584, %v586
        %v591 = vadd.s32 %v587, 1
        %v592 = vsel %vm590, %v591, %v587
        %v593 = vadd.s32 %v588, %v592
        %v594 = vadd.s32 %v593, 536870912
        %v595 = vshrl.u32 %v594, 30
        %v596 = vshll.u32 %v595, 30
        %v597 = vsub.s32 %v593, %v596
        %vm598 = vcmp.lt.s32.totalorder %v597, 0
        %v599 = vsub.s32 0, %v597
        %v600 = vsel %vm598, %v599, %v597
        %v601 = vclz %v600
        %v602 = vsub.s32 %v601, 2
        %vm603 = vcmp.gt.s32.totalorder 0, %v602
        %v604 = vsel %vm603, 0, %v602
        %v605 = vsub.s32 32, %v604
        %v606 = vshll.u32 %v597, %v604
        %v607 = vshrl.u32 %v589, %v605
        %v608 = vor.u32 %v606, %v607
        %v609 = vsub.s32 4294967266, %v604
        %v610 = vadd.s32 %v609, 127
        %v611 = vshll.u32 %v610, 23
        %v612 = vor.u32 4788187, %v611
        %v613 = vand.u32 2147483647, %v612
        %v615 = vcvt.s32.f32 %v608
        %v616 = vmul.f32 %v615, %v613
        %v617 = vxor.u32 %v616, 2147483648
        %v618 = vsel %vm535, %v617, %v616
        %v619 = vsub.s32 4, %v595
        %v620 = vsel %vm535, %v619, %v595
        %v621 = vsel %vm534, %v530, %v618
        %v622 = vsel %vm534, 0, %v620
        %v623 = vcosq.f32.pop %v621
        %v624 = vsinq.f32.pop %v621
        %vm625 = vweird.f32 %v530
        %v626 = vadd.s32 %v622, 3
        %v627 = vand.u32 %v626, 3
        %vm628 = vcmp.lt.s32.totalorder %v627, 2
        %vm629 = vcmp.eq.s32.totalorder %v627, 0
        %v630 = vxor.u32 %v624, 2147483648
        %v631 = vsel %vm629, %v623, %v630
        %vm632 = vcmp.eq.s32.totalorder %v627, 2
        %v633 = vxor.u32 %v623, 2147483648
        %v634 = vsel %vm632, %v633, %v624
        %v635 = vsel %vm628, %v631, %v634
        %v636 = vsel %vm625, nan, %v635
        %v637 = vadd.f32 %v433, %v636
        %v638 = vmax.f32 %v637, 0.0
        %v639 = vadd.f32 %v638, %v454
        %v640 = vld [vmem:[%s5] sm:$0xff]
        %v641 = vld [vmem:[%s5 + $0x8] sm:$0xff]
        %v642 = vld [vmem:[%s5 + $0x10] sm:$0xff]
        %v644 = vsel %vm334, %v640, 0
        %v647 = vsel %vm334, %v641, 0
        %v650 = vsel %vm334, %v642, 0
        %v653 = vsel %vm347, %v639, 0
        %655 = vmatprep.subr.mxu0 0.0
        %656 = vmatpush1.msra.mxu0 0.0
        %657 = vmatprep.subr.mxu0 0.0
        %658 = vmatpush1.msra.mxu0 0.0
        %659 = vmatprep.subr.mxu0 0.0
        %660 = vmatpush1.msra.mxu0 0.0
        %661 = vmatprep.subr.mxu0 0.0
        %662 = vmatpush1.msra.mxu0 0.0
        %663 = vmatprep.subr.mxu0 0.0
        %664 = vmatpush1.msra.mxu0 0.0
        %665 = vmatprep.subr.mxu0 0.0
        %666 = vmatpush1.msra.mxu0 0.0
        %667 = vmatprep.subr.mxu0 0.0
        %668 = vmatpush1.msra.mxu0 0.0
        %669 = vmatprep.subr.mxu0 0.0
        %670 = vmatpush1.msra.mxu0 0.0
        %671 = vmatprep.subr.mxu0 0.0
        %672 = vmatpush1.msra.mxu0 0.0
        %673 = vmatprep.subr.mxu0 0.0
        %674 = vmatpush1.msra.mxu0 0.0
        %675 = vmatprep.subr.mxu0 0.0
        %676 = vmatpush1.msra.mxu0 0.0
        %677 = vmatprep.subr.mxu0 0.0
        %678 = vmatpush1.msra.mxu0 0.0
        %679 = vmatprep.subr.mxu0 0.0
        %680 = vmatpush1.msra.mxu0 0.0
        %681 = vmatprep.subr.mxu0 0.0
        %682 = vmatpush1.msra.mxu0 0.0
        %683 = vmatprep.subr.mxu0 0.0
        %684 = vmatpush1.msra.mxu0 0.0
        %685 = vmatprep.subr.mxu0 0.0
        %686 = vmatpush1.msra.mxu0 %v653
        %687 = vmatprep.subr.mxu0 0.0
        %688 = vmatpush2.msra.mxu0 0.0
        %689 = vmatprep.subr.mxu0 0.0
        %690 = vmatpush2.msra.mxu0 0.0
        %691 = vmatprep.subr.mxu0 0.0
        %692 = vmatpush2.msra.mxu0 0.0
        %693 = vmatprep.subr.mxu0 0.0
        %694 = vmatpush2.msra.mxu0 0.0
        %695 = vmatprep.subr.mxu0 0.0
        %696 = vmatpush2.msra.mxu0 0.0
        %697 = vmatprep.subr.mxu0 0.0
        %698 = vmatpush2.msra.mxu0 0.0
        %699 = vmatprep.subr.mxu0 0.0
        %700 = vmatpush2.msra.mxu0 0.0
        %701 = vmatprep.subr.mxu0 0.0
        %702 = vmatpush2.msra.mxu0 0.0
        %703 = vmatprep.subr.mxu0 0.0
        %704 = vmatpush2.msra.mxu0 0.0
        %705 = vmatprep.subr.mxu0 0.0
        %706 = vmatpush2.msra.mxu0 0.0
        %707 = vmatprep.subr.mxu0 0.0
        %708 = vmatpush2.msra.mxu0 0.0
        %709 = vmatprep.subr.mxu0 0.0
        %710 = vmatpush2.msra.mxu0 0.0
        %711 = vmatprep.subr.mxu0 0.0
        %712 = vmatpush2.msra.mxu0 0.0
        %713 = vmatprep.subr.mxu0 0.0
        %714 = vmatpush2.msra.mxu0 0.0
        %715 = vmatprep.subr.mxu0 0.0
        %716 = vmatpush2.msra.mxu0 0.0
        %717 = vmatprep.subr.mxu0 0.0
        %718 = vmatpush2.msra.mxu0 0.0
        %719 = vmatprep.mubr.f32.mxu0 0.0
        %720 = vmatmul.mubr.f32.gmra.mxu0 %v644
        %v721 = vpop.f32.mrf.mxu0
        %v722 = vadd.f32 0.0, %v721
        %v723 = vpop.f32.mrf.mxu0
        %724 = vmatprep.mubr.f32.mxu0 0.0
        %725 = vmatmul.mubr.f32.gmra.mxu0 %v647
        %v726 = vpop.f32.mrf.mxu0
        %v727 = vadd.f32 0.0, %v726
        %v728 = vpop.f32.mrf.mxu0
        %729 = vmatprep.mubr.f32.mxu0 0.0
        %730 = vmatmul.mubr.f32.gmra.mxu0 %v650
        %v731 = vpop.f32.mrf.mxu0
        %v732 = vadd.f32 0.0, %v731
        %v733 = vpop.f32.mrf.mxu0
        %734 = vdwg.mxu0
        %v735 = vld [vmem:[%s6] sm:$0x7]
        %736 = vrot.lane.b32.xlu0 %v722, 1
        %v737 = vpop.permute.xlu0 %736
        %738 = vrot.lane.b32.xlu0 %v732, 127
        %v739 = vpop.permute.xlu0 %738
        %v740 = vsel %vm442, %v737, 0.0
        %v741 = vadd.f32 %v740, %v727
        %v742 = vsel %vm446, %v739, 0.0
        %v743 = vadd.f32 %v741, %v742
        %745 = vset.pattern.permute.xlu0 0
        %746 = vperm.xlu0 %745, %v735
        %v747 = vpop.permute.xlu0 %746
        %v749 = vadd.f32 %v743, %v747
        %v750 = vadd.f32 %v749, %v312
        %751 = vst [vmem:[%s295] sm:$0x7] %v750
        %s752 = sand.u32 %s191, 1
        %s753 = scalar_lea.sflag [#allocation3], %s752
        %s754 = sand.u32 %s191, 1
        %s755 = smul.addr %s754, 4
        %s756 = scalar_lea.vmem [#allocation2], %s755
        // Predicated region
        $region49: #{tpu_custom_call.1} parent=47 // pred_check
          %p757 = pneg %p201
        $region50: #{tpu_custom_call.1} parent=47 // pred_check_branch
          %759 = sbr.rel (%p757) target = $region52
        $region51: #{tpu_custom_call.1} parent=47 // pred_region
          %s761 = ssub.s32 64, 64
          %762 = vsyncadd %s753, %s761
          %s763 = smul.addr %s21, 64
          %s764 = scalar_lea.hbm %s7, %s763
          %s766 = sshll.u32 %s756, 4
          %s767 = int_to_ptr.vmem [resolvable:$true] %s766
          %769 = dma.vmem_to_hbm [thread:$0]  %s767, 64, %s764, %s753
        $region52: #{tpu_custom_call.1} parent=47 // pred_fallthru
          _
      $region48: #{tpu_custom_call.1} parent=5 // pred_fallthru
        _
      %p770 = scmp.le.s32.totalorder 2, %s16
      // Predicated region
      $region53: #{tpu_custom_call.1} parent=5 // pred_check
        %p771 = pneg %p770
      $region54: #{tpu_custom_call.1} parent=5 // pred_check_branch
        %773 = sbr.rel (%p771) target = $region56
      $region55: #{tpu_custom_call.1} parent=5 // pred_region
        %s774 = ssub.s32 %s16, 2
        // Predicated region
        $region57: #{tpu_custom_call.1} parent=55 // pred_check
          %p775 = pneg %p207
        $region58: #{tpu_custom_call.1} parent=55 // pred_check_branch
          %777 = sbr.rel (%p775) target = $region60
        $region59: #{tpu_custom_call.1} parent=55 // pred_region
          %s778 = sand.u32 %s192, 1
          %s779 = scalar_lea.sflag [#allocation3], %s778
          %s780 = sand.u32 %s192, 1
          %s781 = smul.addr %s780, 4
          %s782 = scalar_lea.vmem [#allocation2], %s781
          %783 = dma.done %s779, 64
        $region60: #{tpu_custom_call.1} parent=55 // pred_fallthru
          _
      $region56: #{tpu_custom_call.1} parent=5 // pred_fallthru
        _
    $region6: #{tpu_custom_call.1} parent=1 // loop_footer
      %s20 = sadd.s32 1, %s16
    $region7: #{tpu_custom_call.1} parent=1 // loop_footer_branch
      %15 = sbr.rel target = $region3
    $region8: #{tpu_custom_call.1} parent=1 // loop_exit
      _
    %784 = vsyncpa [#allocation3], 1
    %s785 = scalar_lea.sflag [#allocation3], 1
    %786 = vsyncpa %s785, 1

</llo_original>
